<compile_context>
chip_gen: v7x
topology: tpu7x:2x2x1
jax: 0.10.0
libtpu: 0.0.40
codegen_flags: <defaults>
</compile_context>

<pallas_src>
import math

import jax
import jax.numpy as jnp
from jax import lax
from jax.experimental import pallas as pl
from jax.experimental.pallas import tpu as pltpu

_INV_SQRT2 = 1.0 / math.sqrt(2.0)


# ----------------------------------------------------------------------------
# One-time feature / hardware probes (module scope, not per forward call).
# ----------------------------------------------------------------------------
def _supports_buffered():
    """Narrow check: does this jax expose pl.Buffered + pipeline_mode?"""
    if not hasattr(pl, "Buffered"):
        return False
    try:
        pl.BlockSpec((8, 128), lambda i: (0, 0), pipeline_mode=pl.Buffered(1))
        return True
    except TypeError:
        return False


_HAS_BUFFERED = _supports_buffered()


def _vmem_capacity_bytes():
    """Per-TensorCore VMEM capacity; conservative 64 MiB fallback (v7x)."""
    try:
        cap = getattr(pltpu.get_tpu_info(), "vmem_capacity_bytes", None)
        if cap:
            return int(cap)
    except Exception:
        pass
    return 64 << 20


_VMEM_CAP = _vmem_capacity_bytes()
_VMEM_HEADROOM = 8 << 20          # leave room for compiler scratch / semaphores


def _round_up(v, m):
    return ((v + m - 1) // m) * m


# ----------------------------------------------------------------------------
# Kernel
# ----------------------------------------------------------------------------
def embedfc_kernel(x_ref, w1_ref, b1_ref, w2_ref, b2_ref, o_ref):
    """Fused Linear -> exact GELU -> Linear for one batch tile.

    Weights are pre-padded to a 128-multiple width (emb_p); the output ref is
    the true emb_dim wide, so only the real columns hit HBM.
    """
    # Cast for the MXU inside the kernel (no-op on the f32 path; avoids an
    # extra HBM pass over x on the bf16 path).
    x = x_ref[...].astype(w1_ref.dtype)
    # First linear (MXU matmul, f32 accumulation); bias kept in f32.
    h = jnp.dot(x, w1_ref[...], preferred_element_type=jnp.float32) + b1_ref[...]
    # Exact GELU in f32 (matches torch.nn.GELU default, erf formulation).
    g = 0.5 * h * (1.0 + lax.erf(h * _INV_SQRT2))
    # Second linear; cast the activation to the weight dtype only for the MXU.
    y = jnp.dot(g.astype(w2_ref.dtype), w2_ref[...],
                preferred_element_type=jnp.float32) + b2_ref[...]
    emb_dim = o_ref.shape[-1]               # static slice: drop pad columns
    o_ref[...] = y[:, :emb_dim].astype(o_ref.dtype)


# ----------------------------------------------------------------------------
# Parameter preparation (do ONCE at setup, not per forward call)
# ----------------------------------------------------------------------------
def prepare_embed_fc_params(w1, b1, w2, b2, *, mxu_dtype=None):
    """Pad weights to a lane-dense (128-multiple) embedding width and cast for
    the MXU.  Pad columns of w1/b1 give h==0, GELU(0)==0, and pad rows/cols of
    w2/b2 are zero, so the padded columns never reach the output -> numerics
    unchanged.  mxu_dtype=jnp.bfloat16 is a valid fast path on v5e/v6e/v7x
    (accumulation, bias add and GELU remain f32)."""
    input_dim, emb_dim = w1.shape
    emb_p = _round_up(emb_dim, 128)
    pad = emb_p - emb_dim
    if pad:
        w1 = jnp.pad(w1, ((0, 0), (0, pad)))
        w2 = jnp.pad(w2, ((0, pad), (0, pad)))
        b1 = jnp.pad(b1, (0, pad))
        b2 = jnp.pad(b2, (0, pad))
    if mxu_dtype is not None:
        w1 = w1.astype(mxu_dtype)
        w2 = w2.astype(mxu_dtype)
    b1 = b1.reshape(1, emb_p).astype(jnp.float32)
    b2 = b2.reshape(1, emb_p).astype(jnp.float32)
    return {"w1": w1, "b1": b1, "w2": w2, "b2": b2,
            "input_dim": input_dim, "emb_dim": emb_dim, "emb_p": emb_p}


# ----------------------------------------------------------------------------
# Tiling heuristics
# ----------------------------------------------------------------------------
def _choose_block_n(n, input_dim, emb_p, emb_dim, act_bytes, w_bytes, out_bytes):
    """Largest batch tile that fits the generation-aware VMEM budget, with
    (8,128)-padding-aware accounting and a >=2-block guarantee for megacore."""
    sublane = 8 if act_bytes >= 4 else 16
    if n <= 256:
        return n                       # per-step overhead dominates; one tile

    # Lane/sublane-padding-aware per-row VMEM footprint.
    in_row = _round_up(input_dim, 128) * act_bytes       # x tile row
    out_row = _round_up(emb_dim, 128) * out_bytes        # out tile row
    f32_row = 2 * emb_p * 4                              # h / g intermediates
    weight_bytes = (input_dim * emb_p + emb_p * emb_p) * w_bytes + 2 * emb_p * 4

    budget = max(_VMEM_CAP - _VMEM_HEADROOM, 16 << 20)
    avail = budget - weight_bytes                        # weights single-buffered
    per_row = 2 * (in_row + out_row) + f32_row           # double-buffered x/out
    if avail <= per_row * sublane:
        # TODO(synk): for very large emb_dim (w2 no longer fits VMEM) add a
        # second grid axis tiling w2's output columns.
        return sublane

    bn = min(int(avail // per_row), 1024)                # HBM-roofline sweet spot
    if bn >= 128:
        bn = (bn // 128) * 128                           # fill MXU M dim
    else:
        bn = max(sublane, (bn // sublane) * sublane)

    # v7x megacore: make sure the ("parallel",) batch axis has >= 2 blocks so
    # both TensorCores get work (also re-enables input/output pipelining).
    bn = min(bn, _round_up(pl.cdiv(n, 2), sublane))
    return max(sublane, min(bn, n))


# ----------------------------------------------------------------------------
# Forward
# ----------------------------------------------------------------------------
def embed_fc(x, params, *, block_n=None):
    """EmbedFC forward: x.view(-1, input_dim) -> Linear -> GELU -> Linear.

    x      : any shape whose elements flatten to (N, input_dim)
    params : dict from prepare_embed_fc_params (pre-padded / pre-cast weights)
    returns (N, emb_dim) in x.dtype
    """
    w1, b1, w2, b2 = params["w1"], params["b1"], params["w2"], params["b2"]
    input_dim, emb_dim, emb_p = params["input_dim"], params["emb_dim"], params["emb_p"]

    out_dtype = x.dtype
    x2d = x.reshape(-1, input_dim)
    n = x2d.shape[0]

    act_bytes = x2d.dtype.itemsize
    w_bytes = w1.dtype.itemsize
    out_bytes = out_dtype.itemsize
    sublane = 8 if act_bytes >= 4 else 16

    if block_n is None:
        block_n = _choose_block_n(n, input_dim, emb_p, emb_dim,
                                  act_bytes, w_bytes, out_bytes)
    elif block_n < n:
        block_n = max(sublane, (block_n // sublane) * sublane)  # (8,128) legality
    else:
        block_n = n

    grid = (pl.cdiv(n, block_n),)

    # Explicit VMEM budget: 2x (x tile + out tile, lane-padded) + one weight
    # copy + margin, capped below physical capacity (headroom for the compiler).
    weight_bytes = (input_dim * emb_p + emb_p * emb_p) * w_bytes + 2 * emb_p * 4
    wbuf = 1 if _HAS_BUFFERED else 2
    tile_bytes = block_n * (_round_up(input_dim, 128) * act_bytes
                            + _round_up(emb_dim, 128) * out_bytes)
    vmem_limit = 2 * tile_bytes + wbuf * weight_bytes + (6 << 20)
    vmem_limit = int(min(max(vmem_limit, 16 << 20), _VMEM_CAP - _VMEM_HEADROOM))

    cost = pl.CostEstimate(
        flops=2 * n * emb_p * (input_dim + emb_p),
        transcendentals=n * emb_p,                    # erf in the GELU
        bytes_accessed=(n * (input_dim * act_bytes + emb_dim * out_bytes)
                        + weight_bytes),
    )

    if _HAS_BUFFERED:
        # Weights/biases are constant across the grid -> one VMEM copy.
        def wspec(shape):
            return pl.BlockSpec(shape, lambda i: (0, 0),
                                pipeline_mode=pl.Buffered(1))
    else:
        def wspec(shape):
            return pl.BlockSpec(shape, lambda i: (0, 0))

    out = pl.pallas_call(
        embedfc_kernel,
        out_shape=jax.ShapeDtypeStruct((n, emb_dim), out_dtype),
        grid_spec=pltpu.PrefetchScalarGridSpec(
            num_scalar_prefetch=0,
            grid=grid,
            in_specs=[
                # activations: tiled (and double-buffered) along batch
                pl.BlockSpec((block_n, input_dim), lambda i: (i, 0)),
                wspec((input_dim, emb_p)),
                wspec((1, emb_p)),
                wspec((emb_p, emb_p)),
                wspec((1, emb_p)),
            ],
            # true-width output: no padded HBM writeback, no post-kernel slice
            out_specs=pl.BlockSpec((block_n, emb_dim), lambda i: (i, 0)),
        ),
        compiler_params=pltpu.CompilerParams(
            dimension_semantics=("parallel",),
            vmem_limit_bytes=vmem_limit),
        cost_estimate=cost,
    )(x2d, w1, b1, w2, b2)

    return out


def embed_fc_from_raw(x, w1, b1, w2, b2, *, block_n=None, mxu_dtype=None):
    """Convenience path: pads/casts per call.  For production, hoist
    prepare_embed_fc_params() to parameter setup and call embed_fc()."""
    params = prepare_embed_fc_params(w1, b1, w2, b2, mxu_dtype=mxu_dtype)
    return embed_fc(x, params, block_n=block_n)


def embed_fc_ref(x, w1, b1, w2, b2):
    """Pure-JAX reference (mirrors the PyTorch module exactly)."""
    input_dim = w1.shape[0]
    x2d = x.reshape(-1, input_dim).astype(jnp.float32)
    h = x2d @ w1.astype(jnp.float32) + b1.astype(jnp.float32)
    g = 0.5 * h * (1.0 + lax.erf(h / jnp.sqrt(2.0)))
    return g @ w2.astype(jnp.float32) + b2.astype(jnp.float32)


if __name__ == "__main__":
    # Module hyperparams (EmbedFC(input_dim, emb_dim)).
    input_dim = 16
    emb_dim = 32

    key = jax.random.PRNGKey(0)
    kx, kw1, kb1, kw2, kb2 = jax.random.split(key, 5)

    # (2, 4, 16, 16) -> flattened to (128, 16) inside the forward, exactly like
    # PyTorch's x.view(-1, input_dim).
    x = jax.random.normal(kx, (2, 4, 16, input_dim), dtype=jnp.float32)

    # Deterministic PyTorch-Linear-style init, stored (in_features, out_features).
    bound1 = 1.0 / math.sqrt(input_dim)
    bound2 = 1.0 / math.sqrt(emb_dim)
    w1 = jax.random.uniform(kw1, (input_dim, emb_dim), jnp.float32, -bound1, bound1)
    b1 = jax.random.uniform(kb1, (emb_dim,), jnp.float32, -bound1, bound1)
    w2 = jax.random.uniform(kw2, (emb_dim, emb_dim), jnp.float32, -bound2, bound2)
    b2 = jax.random.uniform(kb2, (emb_dim,), jnp.float32, -bound2, bound2)

    ref = embed_fc_ref(x, w1, b1, w2, b2)

    # Parameters are padded / cast ONCE, outside the forward path.
    params_f32 = prepare_embed_fc_params(w1, b1, w2, b2)
    params_bf16 = prepare_embed_fc_params(w1, b1, w2, b2, mxu_dtype=jnp.bfloat16)

    # 1) default auto-tiled f32 path (n=128 -> single resident tile).
    out = jax.block_until_ready(embed_fc(x, params_f32))
    assert out.shape == (128, emb_dim), out.shape
    assert jnp.allclose(out, ref, atol=1e-5, rtol=1e-5), \
        float(jnp.max(jnp.abs(out - ref)))

    # 2) explicit small block -> multi-step pipelined grid (grid = (4,)).
    out_tiled = jax.block_until_ready(embed_fc(x, params_f32, block_n=32))
    assert jnp.allclose(out_tiled, ref, atol=1e-5, rtol=1e-5), \
        float(jnp.max(jnp.abs(out_tiled - ref)))

    # 3) bf16 MXU path (f32 accumulation / f32 GELU) -- valid on v5e/v6e/v7x.
    out_bf16 = jax.block_until_ready(embed_fc(x, params_bf16))
    assert jnp.allclose(out_bf16, ref, atol=5e-2, rtol=5e-2), \
        float(jnp.max(jnp.abs(out_bf16 - ref)))

    # 4) convenience raw-weight path (pads/casts per call; correctness check).
    out_raw = jax.block_until_ready(embed_fc_from_raw(x, w1, b1, w2, b2))
    assert jnp.allclose(out_raw, ref, atol=1e-5, rtol=1e-5), \
        float(jnp.max(jnp.abs(out_raw - ref)))

    print("KERNEL_OK")
</pallas_src>

<mosaic_0001>
module attributes {stable_mosaic.version = 11 : i64} {
  func.func @embedfc_kernel(%arg0: i32, %arg1: memref<128x16xf32, #tpu.memory_space<vmem>>, %arg2: memref<16x128xf32, #tpu.memory_space<vmem>>, %arg3: memref<1x128xf32, #tpu.memory_space<vmem>>, %arg4: memref<128x128xf32, #tpu.memory_space<vmem>>, %arg5: memref<1x128xf32, #tpu.memory_space<vmem>>, %arg6: memref<128x32xf32, #tpu.memory_space<vmem>>) attributes {dimension_semantics = [#tpu.dimension_semantics<parallel>], iteration_bounds = array<i64: 1>, scalar_prefetch = 0 : i64, scratch_operands = 0 : i64, tpu.core_type = #tpu.core_type<tc>, window_params = [{transform_indices = @transform_0, window_bounds = array<i64: 128, 16>}, {pipeline_mode = #tpu.pipeline_mode<synchronous>, transform_indices = @transform_1, window_bounds = array<i64: 16, 128>}, {pipeline_mode = #tpu.pipeline_mode<synchronous>, transform_indices = @transform_2, window_bounds = array<i64: 1, 128>}, {pipeline_mode = #tpu.pipeline_mode<synchronous>, transform_indices = @transform_3, window_bounds = array<i64: 128, 128>}, {pipeline_mode = #tpu.pipeline_mode<synchronous>, transform_indices = @transform_4, window_bounds = array<i64: 1, 128>}, {transform_indices = @transform_5, window_bounds = array<i64: 128, 32>}]} {
    %c0 = arith.constant 0 : index
    %c0_0 = arith.constant 0 : index
    %0 = vector.load %arg1[%c0, %c0_0] : memref<128x16xf32, #tpu.memory_space<vmem>>, vector<128x16xf32>
    %c0_1 = arith.constant 0 : index
    %c0_2 = arith.constant 0 : index
    %1 = vector.load %arg2[%c0_1, %c0_2] : memref<16x128xf32, #tpu.memory_space<vmem>>, vector<16x128xf32>
    %cst = arith.constant dense<0.000000e+00> : vector<128x128xf32>
    %2 = tpu.matmul %0, %1, %cst {dimension_numbers = #tpu.dot_dimension_numbers<[1], [0], [0], [1], [0, 0, 1, 1], [], []>} : vector<128x16xf32>, vector<16x128xf32>, vector<128x128xf32> -> vector<128x128xf32>
    %c0_3 = arith.constant 0 : index
    %c0_4 = arith.constant 0 : index
    %3 = vector.load %arg3[%c0_3, %c0_4] : memref<1x128xf32, #tpu.memory_space<vmem>>, vector<1x128xf32>
    %4 = vector.broadcast %3 : vector<1x128xf32> to vector<128x128xf32>
    %5 = arith.addf %2, %4 : vector<128x128xf32>
    %cst_5 = arith.constant 5.000000e-01 : f32
    %6 = vector.broadcast %cst_5 : f32 to vector<128x128xf32>
    %7 = arith.mulf %6, %5 : vector<128x128xf32>
    %cst_6 = arith.constant 0.707106769 : f32
    %8 = vector.broadcast %cst_6 : f32 to vector<128x128xf32>
    %9 = arith.mulf %5, %8 : vector<128x128xf32>
    %10 = math.erf %9 : vector<128x128xf32>
    %cst_7 = arith.constant 1.000000e+00 : f32
    %11 = vector.broadcast %cst_7 : f32 to vector<128x128xf32>
    %12 = arith.addf %11, %10 : vector<128x128xf32>
    %13 = arith.mulf %7, %12 : vector<128x128xf32>
    %c0_8 = arith.constant 0 : index
    %c0_9 = arith.constant 0 : index
    %14 = vector.load %arg4[%c0_8, %c0_9] : memref<128x128xf32, #tpu.memory_space<vmem>>, vector<128x128xf32>
    %cst_10 = arith.constant dense<0.000000e+00> : vector<128x128xf32>
    %15 = tpu.matmul %13, %14, %cst_10 {dimension_numbers = #tpu.dot_dimension_numbers<[1], [0], [0], [1], [0, 0, 1, 1], [], []>} : vector<128x128xf32>, vector<128x128xf32>, vector<128x128xf32> -> vector<128x128xf32>
    %c0_11 = arith.constant 0 : index
    %c0_12 = arith.constant 0 : index
    %16 = vector.load %arg5[%c0_11, %c0_12] : memref<1x128xf32, #tpu.memory_space<vmem>>, vector<1x128xf32>
    %17 = vector.broadcast %16 : vector<1x128xf32> to vector<128x128xf32>
    %18 = arith.addf %15, %17 : vector<128x128xf32>
    %19 = vector.extract_strided_slice %18 {offsets = [0, 0], sizes = [128, 32], strides = [1, 1]} : vector<128x128xf32> to vector<128x32xf32>
    %c0_13 = arith.constant 0 : index
    %c0_14 = arith.constant 0 : index
    %20 = vector.load %arg6[%c0_13, %c0_14] : memref<128x32xf32, #tpu.memory_space<vmem>>, vector<128x32xf32>
    tpu.vector_store %arg6[%c0_13, %c0_14], %19 {strides = array<i32>} : memref<128x32xf32, #tpu.memory_space<vmem>>, vector<128x32xf32>,
    return
  }
  func.func @transform_0(%arg0: i32) -> (i32, i32) {
    %c0_i32 = arith.constant 0 : i32
    %c0_i32_0 = arith.constant 0 : i32
    return %arg0, %c0_i32 : i32, i32
  }
  func.func @transform_1(%arg0: i32) -> (i32, i32) {
    %c0_i32 = arith.constant 0 : i32
    %c0_i32_0 = arith.constant 0 : i32
    %c0_i32_1 = arith.constant 0 : i32
    return %c0_i32, %c0_i32_0 : i32, i32
  }
  func.func @transform_2(%arg0: i32) -> (i32, i32) {
    %c0_i32 = arith.constant 0 : i32
    %c0_i32_0 = arith.constant 0 : i32
    %c0_i32_1 = arith.constant 0 : i32
    return %c0_i32, %c0_i32_0 : i32, i32
  }
  func.func @transform_3(%arg0: i32) -> (i32, i32) {
    %c0_i32 = arith.constant 0 : i32
    %c0_i32_0 = arith.constant 0 : i32
    %c0_i32_1 = arith.constant 0 : i32
    return %c0_i32, %c0_i32_0 : i32, i32
  }
  func.func @transform_4(%arg0: i32) -> (i32, i32) {
    %c0_i32 = arith.constant 0 : i32
    %c0_i32_0 = arith.constant 0 : i32
    %c0_i32_1 = arith.constant 0 : i32
    return %c0_i32, %c0_i32_0 : i32, i32
  }
  func.func @transform_5(%arg0: i32) -> (i32, i32) {
    %c0_i32 = arith.constant 0 : i32
    %c0_i32_0 = arith.constant 0 : i32
    return %arg0, %c0_i32 : i32, i32
  }
}

</mosaic_0001>

<llo_original>
// kernel: tpu_custom_call.1
$region0: #{tpu_custom_call.1}
  #allocation0 [shape = 'u32[]', space=smem, size = 0x4, offset = 0x4, fixed_abs, tag = 'smem constant byte address 0x4 - core index']
  #allocation1 [shape = 'u32[144,128]{1,0:T(1,128)}', space=vmem, size = 0x12000, scoped, tag = 'internal scratch']
  %s0 = inlined_call_operand.vmem [shape: f32[128,16], index: 0, kind: input, shape index: {}]
  %s1 = inlined_call_operand.vmem [shape: f32[16,128], index: 1, kind: input, shape index: {}]
  %s2 = inlined_call_operand.vmem [shape: f32[1,128], index: 2, kind: input, shape index: {}]
  %s3 = inlined_call_operand.vmem [shape: f32[128,128], index: 3, kind: input, shape index: {}]
  %s4 = inlined_call_operand.vmem [shape: f32[1,128], index: 4, kind: input, shape index: {}]
  %s5 = inlined_call_operand.vmem [shape: f32[128,32], index: 5, kind: output, shape index: {}]
  %s6 = sld [smem:[#allocation0]]
  $region30: #{tpu_custom_call.1} parent=0
    _
  %s8 = ssub.s32 1, %s6
  %s9 = scalar_select 0, %s8, %s6
  // Predicated region
  $region2: #{tpu_custom_call.1} parent=0 // pred_check
    _
  $region3: #{tpu_custom_call.1} parent=0 // pred_check_branch
    %11 = sbr.rel (0) target = $region5
  $region4: #{tpu_custom_call.1} parent=0 // pred_region
    _
  $region5: #{tpu_custom_call.1} parent=0 // pred_fallthru
    _
  // Predicated region
  $region6: #{tpu_custom_call.1} parent=0 // pred_check
    _
  $region7: #{tpu_custom_call.1} parent=0 // pred_check_branch
    %13 = sbr.rel (0) target = $region9
  $region8: #{tpu_custom_call.1} parent=0 // pred_region
    _
  $region9: #{tpu_custom_call.1} parent=0 // pred_fallthru
    _
  // Predicated region
  $region10: #{tpu_custom_call.1} parent=0 // pred_check
    _
  $region11: #{tpu_custom_call.1} parent=0 // pred_check_branch
    %15 = sbr.rel (0) target = $region13
  $region12: #{tpu_custom_call.1} parent=0 // pred_region
    _
  $region13: #{tpu_custom_call.1} parent=0 // pred_fallthru
    _
  // Predicated region
  $region14: #{tpu_custom_call.1} parent=0 // pred_check
    _
  $region15: #{tpu_custom_call.1} parent=0 // pred_check_branch
    %17 = sbr.rel (0) target = $region17
  $region16: #{tpu_custom_call.1} parent=0 // pred_region
    _
  $region17: #{tpu_custom_call.1} parent=0 // pred_fallthru
    _
  // Predicated region
  $region18: #{tpu_custom_call.1} parent=0 // pred_check
    _
  $region19: #{tpu_custom_call.1} parent=0 // pred_check_branch
    %19 = sbr.rel (0) target = $region21
  $region20: #{tpu_custom_call.1} parent=0 // pred_region
    _
  $region21: #{tpu_custom_call.1} parent=0 // pred_fallthru
    _
  %v20 = vld [vmem:[%s0] sm:$0xff]
  %v21 = vld [vmem:[%s0 + $0x8] sm:$0xff]
  %v22 = vld [vmem:[%s0 + $0x10] sm:$0xff]
  %v23 = vld [vmem:[%s0 + $0x18] sm:$0xff]
  %v24 = vld [vmem:[%s0 + $0x20] sm:$0xff]
  %v25 = vld [vmem:[%s0 + $0x28] sm:$0xff]
  %v26 = vld [vmem:[%s0 + $0x30] sm:$0xff]
  %v27 = vld [vmem:[%s0 + $0x38] sm:$0xff]
  %v28 = vld [vmem:[%s0 + $0x40] sm:$0xff]
  %v29 = vld [vmem:[%s0 + $0x48] sm:$0xff]
  %v30 = vld [vmem:[%s0 + $0x50] sm:$0xff]
  %v31 = vld [vmem:[%s0 + $0x58] sm:$0xff]
  %v32 = vld [vmem:[%s0 + $0x60] sm:$0xff]
  %v33 = vld [vmem:[%s0 + $0x68] sm:$0xff]
  %v34 = vld [vmem:[%s0 + $0x70] sm:$0xff]
  %v35 = vld [vmem:[%s0 + $0x78] sm:$0xff]
  %v36 = vld [vmem:[%s1] sm:$0xff]
  %v37 = vld [vmem:[%s1 + $0x8] sm:$0xff]
  %v38 = vld [vmem:[%s2] sm:$0x1]
  %v40 = vlaneseq
  %v41 = vshrl.u32 %v40, 7
  %v42 = vsub.s32 0, %v41
  %v43 = vrot.slane %v38, %v42
  %vm45 = vcmask 130048
  %v47 = vsel %vm45, %v20, 0
  %v50 = vsel %vm45, %v21, 0
  %v53 = vsel %vm45, %v22, 0
  %v56 = vsel %vm45, %v23, 0
  %v59 = vsel %vm45, %v24, 0
  %v62 = vsel %vm45, %v25, 0
  %v65 = vsel %vm45, %v26, 0
  %v68 = vsel %vm45, %v27, 0
  %v71 = vsel %vm45, %v28, 0
  %v74 = vsel %vm45, %v29, 0
  %v77 = vsel %vm45, %v30, 0
  %v80 = vsel %vm45, %v31, 0
  %v83 = vsel %vm45, %v32, 0
  %v86 = vsel %vm45, %v33, 0
  %v89 = vsel %vm45, %v34, 0
  %v92 = vsel %vm45, %v35, 0
  %94 = vmatprep.subr.mxu0 0.0
  %95 = vmatpush1.msra.mxu0 %v36
  %96 = vmatprep.subr.mxu0 0.0
  %97 = vmatpush1.msra.mxu0 %v37
  %98 = vmatprep.subr.mxu0 0.0
  %99 = vmatpush1.msra.mxu0 0.0
  %100 = vmatprep.subr.mxu0 0.0
  %101 = vmatpush1.msra.mxu0 0.0
  %102 = vmatprep.subr.mxu0 0.0
  %103 = vmatpush1.msra.mxu0 0.0
  %104 = vmatprep.subr.mxu0 0.0
  %105 = vmatpush1.msra.mxu0 0.0
  %106 = vmatprep.subr.mxu0 0.0
  %107 = vmatpush1.msra.mxu0 0.0
  %108 = vmatprep.subr.mxu0 0.0
  %109 = vmatpush1.msra.mxu0 0.0
  %110 = vmatprep.subr.mxu0 0.0
  %111 = vmatpush1.msra.mxu0 0.0
  %112 = vmatprep.subr.mxu0 0.0
  %113 = vmatpush1.msra.mxu0 0.0
  %114 = vmatprep.subr.mxu0 0.0
  %115 = vmatpush1.msra.mxu0 0.0
  %116 = vmatprep.subr.mxu0 0.0
  %117 = vmatpush1.msra.mxu0 0.0
  %118 = vmatprep.subr.mxu0 0.0
  %119 = vmatpush1.msra.mxu0 0.0
  %120 = vmatprep.subr.mxu0 0.0
  %121 = vmatpush1.msra.mxu0 0.0
  %122 = vmatprep.subr.mxu0 0.0
  %123 = vmatpush1.msra.mxu0 0.0
  %124 = vmatprep.subr.mxu0 0.0
  %125 = vmatpush1.msra.mxu0 0.0
  %126 = vmatprep.subr.mxu0 0.0
  %127 = vmatpush1.msra.mxu0 0.0
  %128 = vmatprep.subr.mxu0 0.0
  %129 = vmatpush1.msra.mxu0 0.0
  %130 = vmatprep.subr.mxu0 0.0
  %131 = vmatpush1.msra.mxu0 0.0
  %132 = vmatprep.subr.mxu0 0.0
  %133 = vmatpush1.msra.mxu0 0.0
  %134 = vmatprep.subr.mxu0 0.0
  %135 = vmatpush1.msra.mxu0 0.0
  %136 = vmatprep.subr.mxu0 0.0
  %137 = vmatpush1.msra.mxu0 0.0
  %138 = vmatprep.subr.mxu0 0.0
  %139 = vmatpush1.msra.mxu0 0.0
  %140 = vmatprep.subr.mxu0 0.0
  %141 = vmatpush1.msra.mxu0 0.0
  %142 = vmatprep.subr.mxu0 0.0
  %143 = vmatpush1.msra.mxu0 0.0
  %144 = vmatprep.subr.mxu0 0.0
  %145 = vmatpush1.msra.mxu0 0.0
  %146 = vmatprep.subr.mxu0 0.0
  %147 = vmatpush1.msra.mxu0 0.0
  %148 = vmatprep.subr.mxu0 0.0
  %149 = vmatpush1.msra.mxu0 0.0
  %150 = vmatprep.subr.mxu0 0.0
  %151 = vmatpush1.msra.mxu0 0.0
  %152 = vmatprep.subr.mxu0 0.0
  %153 = vmatpush1.msra.mxu0 0.0
  %154 = vmatprep.subr.mxu0 0.0
  %155 = vmatpush1.msra.mxu0 0.0
  %156 = vmatprep.subr.mxu0 0.0
  %157 = vmatpush1.msra.mxu0 0.0
  %158 = vmatprep.mubr.f32.mxu0 0.0
  %159 = vmatmul.mubr.f32.gmra.mrb[0].mxu0 %v47
  %v160 = vpop.f32.mrb[0].mxu0
  %v161 = vadd.f32 %v43, %v160
  %v162 = vpop.f32.mrb[0].mxu0
  %163 = vmatprep.mubr.f32.mxu0 0.0
  %164 = vmatmul.mubr.f32.gmra.mrb[0].mxu0 %v50
  %v165 = vpop.f32.mrb[0].mxu0
  %v166 = vadd.f32 %v43, %v165
  %v167 = vpop.f32.mrb[0].mxu0
  %168 = vmatprep.mubr.f32.mxu0 0.0
  %169 = vmatmul.mubr.f32.gmra.mrb[0].mxu0 %v53
  %v170 = vpop.f32.mrb[0].mxu0
  %v171 = vadd.f32 %v43, %v170
  %v172 = vpop.f32.mrb[0].mxu0
  %173 = vmatprep.mubr.f32.mxu0 0.0
  %174 = vmatmul.mubr.f32.gmra.mrb[0].mxu0 %v56
  %v175 = vpop.f32.mrb[0].mxu0
  %v176 = vadd.f32 %v43, %v175
  %v177 = vpop.f32.mrb[0].mxu0
  %178 = vmatprep.mubr.f32.mxu0 0.0
  %179 = vmatmul.mubr.f32.gmra.mrb[0].mxu0 %v59
  %v180 = vpop.f32.mrb[0].mxu0
  %v181 = vadd.f32 %v43, %v180
  %v182 = vpop.f32.mrb[0].mxu0
  %183 = vmatprep.mubr.f32.mxu0 0.0
  %184 = vmatmul.mubr.f32.gmra.mrb[0].mxu0 %v62
  %v185 = vpop.f32.mrb[0].mxu0
  %v186 = vadd.f32 %v43, %v185
  %v187 = vpop.f32.mrb[0].mxu0
  %188 = vmatprep.mubr.f32.mxu0 0.0
  %189 = vmatmul.mubr.f32.gmra.mrb[0].mxu0 %v65
  %v190 = vpop.f32.mrb[0].mxu0
  %v191 = vadd.f32 %v43, %v190
  %v192 = vpop.f32.mrb[0].mxu0
  %193 = vmatprep.mubr.f32.mxu0 0.0
  %194 = vmatmul.mubr.f32.gmra.mrb[0].mxu0 %v68
  %v195 = vpop.f32.mrb[0].mxu0
  %v196 = vadd.f32 %v43, %v195
  %v197 = vpop.f32.mrb[0].mxu0
  %198 = vmatprep.mubr.f32.mxu0 0.0
  %199 = vmatmul.mubr.f32.gmra.mrb[0].mxu0 %v71
  %v200 = vpop.f32.mrb[0].mxu0
  %v201 = vadd.f32 %v43, %v200
  %v202 = vpop.f32.mrb[0].mxu0
  %203 = vmatprep.mubr.f32.mxu0 0.0
  %204 = vmatmul.mubr.f32.gmra.mrb[0].mxu0 %v74
  %v205 = vpop.f32.mrb[0].mxu0
  %v206 = vadd.f32 %v43, %v205
  %v207 = vpop.f32.mrb[0].mxu0
  %208 = vmatprep.mubr.f32.mxu0 0.0
  %209 = vmatmul.mubr.f32.gmra.mrb[0].mxu0 %v77
  %v210 = vpop.f32.mrb[0].mxu0
  %v211 = vadd.f32 %v43, %v210
  %v212 = vpop.f32.mrb[0].mxu0
  %213 = vmatprep.mubr.f32.mxu0 0.0
  %214 = vmatmul.mubr.f32.gmra.mrb[0].mxu0 %v80
  %v215 = vpop.f32.mrb[0].mxu0
  %v216 = vadd.f32 %v43, %v215
  %v217 = vpop.f32.mrb[0].mxu0
  %218 = vmatprep.mubr.f32.mxu0 0.0
  %219 = vmatmul.mubr.f32.gmra.mrb[0].mxu0 %v83
  %v220 = vpop.f32.mrb[0].mxu0
  %v221 = vadd.f32 %v43, %v220
  %v222 = vpop.f32.mrb[0].mxu0
  %223 = vmatprep.mubr.f32.mxu0 0.0
  %224 = vmatmul.mubr.f32.gmra.mrb[0].mxu0 %v86
  %v225 = vpop.f32.mrb[0].mxu0
  %v226 = vadd.f32 %v43, %v225
  %v227 = vpop.f32.mrb[0].mxu0
  %228 = vmatprep.mubr.f32.mxu0 0.0
  %229 = vmatmul.mubr.f32.gmra.mrb[0].mxu0 %v89
  %v230 = vpop.f32.mrb[0].mxu0
  %v231 = vadd.f32 %v43, %v230
  %v232 = vpop.f32.mrb[0].mxu0
  %233 = vmatprep.mubr.f32.mxu0 0.0
  %234 = vmatmul.mubr.f32.gmra.mrb[0].mxu0 %v92
  %v235 = vpop.f32.mrb[0].mxu0
  %v236 = vadd.f32 %v43, %v235
  %v237 = vpop.f32.mrb[0].mxu0
  %238 = vdwg.mxu0
  %v239 = vmul.f32 %v161, 0.5
  %v240 = vmul.f32 %v166, 0.5
  %v241 = vmul.f32 %v171, 0.5
  %v242 = vmul.f32 %v176, 0.5
  %v243 = vmul.f32 %v181, 0.5
  %v244 = vmul.f32 %v186, 0.5
  %v245 = vmul.f32 %v191, 0.5
  %v246 = vmul.f32 %v196, 0.5
  %v247 = vmul.f32 %v201, 0.5
  %v248 = vmul.f32 %v206, 0.5
  %v249 = vmul.f32 %v211, 0.5
  %v250 = vmul.f32 %v216, 0.5
  %v251 = vmul.f32 %v221, 0.5
  %v252 = vmul.f32 %v226, 0.5
  %v253 = vmul.f32 %v231, 0.5
  %v254 = vmul.f32 %v236, 0.5
  %v255 = vmul.f32 %v161, 0.70710677
  %v256 = vmul.f32 %v166, 0.70710677
  %v257 = vmul.f32 %v171, 0.70710677
  %v258 = vmul.f32 %v176, 0.70710677
  %v259 = vmul.f32 %v181, 0.70710677
  %v260 = vmul.f32 %v186, 0.70710677
  %v261 = vmul.f32 %v191, 0.70710677
  %v262 = vmul.f32 %v196, 0.70710677
  %v263 = vmul.f32 %v201, 0.70710677
  %v264 = vmul.f32 %v206, 0.70710677
  %v265 = vmul.f32 %v211, 0.70710677
  %v266 = vmul.f32 %v216, 0.70710677
  %v267 = vmul.f32 %v221, 0.70710677
  %v268 = vmul.f32 %v226, 0.70710677
  %v269 = vmul.f32 %v231, 0.70710677
  %v270 = vmul.f32 %v236, 0.70710677
  %v271 = verf.f32.pop %v255
  %v272 = verf.f32.pop %v256
  %v273 = verf.f32.pop %v257
  %v274 = verf.f32.pop %v258
  %v275 = verf.f32.pop %v259
  %v276 = verf.f32.pop %v260
  %v277 = verf.f32.pop %v261
  %v278 = verf.f32.pop %v262
  %v279 = verf.f32.pop %v263
  %v280 = verf.f32.pop %v264
  %v281 = verf.f32.pop %v265
  %v282 = verf.f32.pop %v266
  %v283 = verf.f32.pop %v267
  %v284 = verf.f32.pop %v268
  %v285 = verf.f32.pop %v269
  %v286 = verf.f32.pop %v270
  %v287 = vadd.f32 %v271, 1.0
  %v288 = vadd.f32 %v272, 1.0
  %v289 = vadd.f32 %v273, 1.0
  %v290 = vadd.f32 %v274, 1.0
  %v291 = vadd.f32 %v275, 1.0
  %v292 = vadd.f32 %v276, 1.0
  %v293 = vadd.f32 %v277, 1.0
  %v294 = vadd.f32 %v278, 1.0
  %v295 = vadd.f32 %v279, 1.0
  %v296 = vadd.f32 %v280, 1.0
  %v297 = vadd.f32 %v281, 1.0
  %v298 = vadd.f32 %v282, 1.0
  %v299 = vadd.f32 %v283, 1.0
  %v300 = vadd.f32 %v284, 1.0
  %v301 = vadd.f32 %v285, 1.0
  %v302 = vadd.f32 %v286, 1.0
  %v303 = vmul.f32 %v239, %v287
  %v304 = vmul.f32 %v240, %v288
  %v305 = vmul.f32 %v241, %v289
  %v306 = vmul.f32 %v242, %v290
  %v307 = vmul.f32 %v243, %v291
  %v308 = vmul.f32 %v244, %v292
  %v309 = vmul.f32 %v245, %v293
  %v310 = vmul.f32 %v246, %v294
  %v311 = vmul.f32 %v247, %v295
  %v312 = vmul.f32 %v248, %v296
  %v313 = vmul.f32 %v249, %v297
  %v314 = vmul.f32 %v250, %v298
  %v315 = vmul.f32 %v251, %v299
  %v316 = vmul.f32 %v252, %v300
  %v317 = vmul.f32 %v253, %v301
  %v318 = vmul.f32 %v254, %v302
  %v319 = vld [vmem:[%s3] sm:$0xff]
  %v320 = vld [vmem:[%s3 + $0x8] sm:$0xff]
  %v321 = vld [vmem:[%s3 + $0x10] sm:$0xff]
  %v322 = vld [vmem:[%s3 + $0x18] sm:$0xff]
  %v323 = vld [vmem:[%s3 + $0x20] sm:$0xff]
  %v324 = vld [vmem:[%s3 + $0x28] sm:$0xff]
  %v325 = vld [vmem:[%s3 + $0x30] sm:$0xff]
  %v326 = vld [vmem:[%s3 + $0x38] sm:$0xff]
  %v327 = vld [vmem:[%s3 + $0x40] sm:$0xff]
  %v328 = vld [vmem:[%s3 + $0x48] sm:$0xff]
  %v329 = vld [vmem:[%s3 + $0x50] sm:$0xff]
  %v330 = vld [vmem:[%s3 + $0x58] sm:$0xff]
  %v331 = vld [vmem:[%s3 + $0x60] sm:$0xff]
  %v332 = vld [vmem:[%s3 + $0x68] sm:$0xff]
  %v333 = vld [vmem:[%s3 + $0x70] sm:$0xff]
  %v334 = vld [vmem:[%s3 + $0x78] sm:$0xff]
  %v335 = vld [vmem:[%s4] sm:$0x1]
  %v337 = vlaneseq
  %v338 = vshrl.u32 %v337, 7
  %v339 = vsub.s32 0, %v338
  %v340 = vrot.slane %v335, %v339
  %342 = vmatprep.subr.mxu0 0.0
  %343 = vmatpush1.msra.mxu0 %v319
  %344 = vmatprep.subr.mxu0 0.0
  %345 = vmatpush1.msra.mxu0 %v320
  %346 = vmatprep.subr.mxu0 0.0
  %347 = vmatpush1.msra.mxu0 %v321
  %348 = vmatprep.subr.mxu0 0.0
  %349 = vmatpush1.msra.mxu0 %v322
  %350 = vmatprep.subr.mxu0 0.0
  %351 = vmatpush1.msra.mxu0 %v323
  %352 = vmatprep.subr.mxu0 0.0
  %353 = vmatpush1.msra.mxu0 %v324
  %354 = vmatprep.subr.mxu0 0.0
  %355 = vmatpush1.msra.mxu0 %v325
  %356 = vmatprep.subr.mxu0 0.0
  %357 = vmatpush1.msra.mxu0 %v326
  %358 = vmatprep.subr.mxu0 0.0
  %359 = vmatpush1.msra.mxu0 %v327
  %360 = vmatprep.subr.mxu0 0.0
  %361 = vmatpush1.msra.mxu0 %v328
  %362 = vmatprep.subr.mxu0 0.0
  %363 = vmatpush1.msra.mxu0 %v329
  %364 = vmatprep.subr.mxu0 0.0
  %365 = vmatpush1.msra.mxu0 %v330
  %366 = vmatprep.subr.mxu0 0.0
  %367 = vmatpush1.msra.mxu0 %v331
  %368 = vmatprep.subr.mxu0 0.0
  %369 = vmatpush1.msra.mxu0 %v332
  %370 = vmatprep.subr.mxu0 0.0
  %371 = vmatpush1.msra.mxu0 %v333
  %372 = vmatprep.subr.mxu0 0.0
  %373 = vmatpush1.msra.mxu0 %v334
  %374 = vmatprep.subr.mxu0 0.0
  %375 = vmatpush1.msra.mxu0 0.0
  %376 = vmatprep.subr.mxu0 0.0
  %377 = vmatpush1.msra.mxu0 0.0
  %378 = vmatprep.subr.mxu0 0.0
  %379 = vmatpush1.msra.mxu0 0.0
  %380 = vmatprep.subr.mxu0 0.0
  %381 = vmatpush1.msra.mxu0 0.0
  %382 = vmatprep.subr.mxu0 0.0
  %383 = vmatpush1.msra.mxu0 0.0
  %384 = vmatprep.subr.mxu0 0.0
  %385 = vmatpush1.msra.mxu0 0.0
  %386 = vmatprep.subr.mxu0 0.0
  %387 = vmatpush1.msra.mxu0 0.0
  %388 = vmatprep.subr.mxu0 0.0
  %389 = vmatpush1.msra.mxu0 0.0
  %390 = vmatprep.subr.mxu0 0.0
  %391 = vmatpush1.msra.mxu0 0.0
  %392 = vmatprep.subr.mxu0 0.0
  %393 = vmatpush1.msra.mxu0 0.0
  %394 = vmatprep.subr.mxu0 0.0
  %395 = vmatpush1.msra.mxu0 0.0
  %396 = vmatprep.subr.mxu0 0.0
  %397 = vmatpush1.msra.mxu0 0.0
  %398 = vmatprep.subr.mxu0 0.0
  %399 = vmatpush1.msra.mxu0 0.0
  %400 = vmatprep.subr.mxu0 0.0
  %401 = vmatpush1.msra.mxu0 0.0
  %402 = vmatprep.subr.mxu0 0.0
  %403 = vmatpush1.msra.mxu0 0.0
  %404 = vmatprep.subr.mxu0 0.0
  %405 = vmatpush1.msra.mxu0 0.0
  %406 = vmatprep.mubr.f32.mxu0 0.0
  %407 = vmatmul.mubr.f32.gmra.mrb[0].mxu0 %v303
  %v408 = vpop.f32.mrb[0].mxu0
  %v409 = vadd.f32 %v340, %v408
  %v410 = vpop.f32.mrb[0].mxu0
  %411 = vmatprep.mubr.f32.mxu0 0.0
  %412 = vmatmul.mubr.f32.gmra.mrb[0].mxu0 %v304
  %v413 = vpop.f32.mrb[0].mxu0
  %v414 = vadd.f32 %v340, %v413
  %v415 = vpop.f32.mrb[0].mxu0
  %416 = vmatprep.mubr.f32.mxu0 0.0
  %417 = vmatmul.mubr.f32.gmra.mrb[0].mxu0 %v305
  %v418 = vpop.f32.mrb[0].mxu0
  %v419 = vadd.f32 %v340, %v418
  %v420 = vpop.f32.mrb[0].mxu0
  %421 = vmatprep.mubr.f32.mxu0 0.0
  %422 = vmatmul.mubr.f32.gmra.mrb[0].mxu0 %v306
  %v423 = vpop.f32.mrb[0].mxu0
  %v424 = vadd.f32 %v340, %v423
  %v425 = vpop.f32.mrb[0].mxu0
  %426 = vmatprep.mubr.f32.mxu0 0.0
  %427 = vmatmul.mubr.f32.gmra.mrb[0].mxu0 %v307
  %v428 = vpop.f32.mrb[0].mxu0
  %v429 = vadd.f32 %v340, %v428
  %v430 = vpop.f32.mrb[0].mxu0
  %431 = vmatprep.mubr.f32.mxu0 0.0
  %432 = vmatmul.mubr.f32.gmra.mrb[0].mxu0 %v308
  %v433 = vpop.f32.mrb[0].mxu0
  %v434 = vadd.f32 %v340, %v433
  %v435 = vpop.f32.mrb[0].mxu0
  %436 = vmatprep.mubr.f32.mxu0 0.0
  %437 = vmatmul.mubr.f32.gmra.mrb[0].mxu0 %v309
  %v438 = vpop.f32.mrb[0].mxu0
  %v439 = vadd.f32 %v340, %v438
  %v440 = vpop.f32.mrb[0].mxu0
  %441 = vmatprep.mubr.f32.mxu0 0.0
  %442 = vmatmul.mubr.f32.gmra.mrb[0].mxu0 %v310
  %v443 = vpop.f32.mrb[0].mxu0
  %v444 = vadd.f32 %v340, %v443
  %v445 = vpop.f32.mrb[0].mxu0
  %446 = vmatprep.mubr.f32.mxu0 0.0
  %447 = vmatmul.mubr.f32.gmra.mrb[0].mxu0 %v311
  %v448 = vpop.f32.mrb[0].mxu0
  %v449 = vadd.f32 %v340, %v448
  %v450 = vpop.f32.mrb[0].mxu0
  %451 = vmatprep.mubr.f32.mxu0 0.0
  %452 = vmatmul.mubr.f32.gmra.mrb[0].mxu0 %v312
  %v453 = vpop.f32.mrb[0].mxu0
  %v454 = vadd.f32 %v340, %v453
  %v455 = vpop.f32.mrb[0].mxu0
  %456 = vmatprep.mubr.f32.mxu0 0.0
  %457 = vmatmul.mubr.f32.gmra.mrb[0].mxu0 %v313
  %v458 = vpop.f32.mrb[0].mxu0
  %v459 = vadd.f32 %v340, %v458
  %v460 = vpop.f32.mrb[0].mxu0
  %461 = vmatprep.mubr.f32.mxu0 0.0
  %462 = vmatmul.mubr.f32.gmra.mrb[0].mxu0 %v314
  %v463 = vpop.f32.mrb[0].mxu0
  %v464 = vadd.f32 %v340, %v463
  %v465 = vpop.f32.mrb[0].mxu0
  %466 = vmatprep.mubr.f32.mxu0 0.0
  %467 = vmatmul.mubr.f32.gmra.mrb[0].mxu0 %v315
  %v468 = vpop.f32.mrb[0].mxu0
  %v469 = vadd.f32 %v340, %v468
  %v470 = vpop.f32.mrb[0].mxu0
  %471 = vmatprep.mubr.f32.mxu0 0.0
  %472 = vmatmul.mubr.f32.gmra.mrb[0].mxu0 %v316
  %v473 = vpop.f32.mrb[0].mxu0
  %v474 = vadd.f32 %v340, %v473
  %v475 = vpop.f32.mrb[0].mxu0
  %476 = vmatprep.mubr.f32.mxu0 0.0
  %477 = vmatmul.mubr.f32.gmra.mrb[0].mxu0 %v317
  %v478 = vpop.f32.mrb[0].mxu0
  %v479 = vadd.f32 %v340, %v478
  %v480 = vpop.f32.mrb[0].mxu0
  %481 = vmatprep.mubr.f32.mxu0 0.0
  %482 = vmatmul.mubr.f32.gmra.mrb[0].mxu0 %v318
  %v483 = vpop.f32.mrb[0].mxu0
  %v484 = vadd.f32 %v340, %v483
  %v485 = vpop.f32.mrb[0].mxu0
  %486 = vdwg.mxu0
  %vm487 = vcmask 261120
  %488 = vst.msk [vmem:[%s5] sm:$0xff] %vm487, %v409
  %489 = vst.msk [vmem:[%s5 + $0x8] sm:$0xff] %vm487, %v414
  %490 = vst.msk [vmem:[%s5 + $0x10] sm:$0xff] %vm487, %v419
  %491 = vst.msk [vmem:[%s5 + $0x18] sm:$0xff] %vm487, %v424
  %492 = vst.msk [vmem:[%s5 + $0x20] sm:$0xff] %vm487, %v429
  %493 = vst.msk [vmem:[%s5 + $0x28] sm:$0xff] %vm487, %v434
  %494 = vst.msk [vmem:[%s5 + $0x30] sm:$0xff] %vm487, %v439
  %495 = vst.msk [vmem:[%s5 + $0x38] sm:$0xff] %vm487, %v444
  %496 = vst.msk [vmem:[%s5 + $0x40] sm:$0xff] %vm487, %v449
  %497 = vst.msk [vmem:[%s5 + $0x48] sm:$0xff] %vm487, %v454
  %498 = vst.msk [vmem:[%s5 + $0x50] sm:$0xff] %vm487, %v459
  %499 = vst.msk [vmem:[%s5 + $0x58] sm:$0xff] %vm487, %v464
  %500 = vst.msk [vmem:[%s5 + $0x60] sm:$0xff] %vm487, %v469
  %501 = vst.msk [vmem:[%s5 + $0x68] sm:$0xff] %vm487, %v474
  %502 = vst.msk [vmem:[%s5 + $0x70] sm:$0xff] %vm487, %v479
  %503 = vst.msk [vmem:[%s5 + $0x78] sm:$0xff] %vm487, %v484
  // Predicated region
  $region22: #{tpu_custom_call.1} parent=0 // pred_check
    _
  $region23: #{tpu_custom_call.1} parent=0 // pred_check_branch
    %505 = sbr.rel (0) target = $region25
  $region24: #{tpu_custom_call.1} parent=0 // pred_region
    _
  $region25: #{tpu_custom_call.1} parent=0 // pred_fallthru
    _
  // Predicated region
  $region26: #{tpu_custom_call.1} parent=0 // pred_check
    _
  $region27: #{tpu_custom_call.1} parent=0 // pred_check_branch
    %507 = sbr.rel (0) target = $region29
  $region28: #{tpu_custom_call.1} parent=0 // pred_region
    _
  $region29: #{tpu_custom_call.1} parent=0 // pred_fallthru
    _

</llo_original>
